<compile_context>
chip_gen: v6e
topology: v6e:2x2x1
jax: 0.10.0
libtpu: 0.0.40
codegen_flags: <defaults>
</compile_context>

<pallas_src>
import jax
import jax.numpy as jnp
from jax.experimental import pallas as pl
from jax.experimental.pallas import tpu as pltpu


def _round_up(v: int, m: int) -> int:
    return ((v + m - 1) // m) * m


def _pick_tiles(n: int, tile: int):
    """Return (n_pad, tm, tn) with tm | n_pad, tn | n_pad, lane/sublane legal."""
    if n <= 128:
        # Single block; block dims equal full (padded) array dims.
        n_pad = _round_up(n, 8)
        return n_pad, n_pad, n_pad
    tile = max(128, _round_up(tile, 128))
    n_pad = _round_up(n, 128)
    # Column tile: largest multiple of 128 <= tile that divides n_pad
    # (bounds padding waste at < 128 samples).
    tn = min(tile, n_pad)
    while n_pad % tn:
        tn -= 128
    # Row tile: keep >= 2 row blocks when possible (v7x 2-TC sharding of the
    # "parallel" i axis); never below 128.
    tm = tn
    while (n_pad // tm) < 2 and tm > 128:
        tm //= 2
    return n_pad, tm, tn


def _svm_kernel(xi_ref, xgj_ref, sqi_ref, sqj_ref, wtj_ref, b_ref, o_ref):
    # xi_ref:  [tm, D]        row block of x
    # xgj_ref: [D,  tn]       column block of (2*gamma*x)^T (pre-scaled, pre-transposed)
    # sqi_ref: [tm, 1]        gamma*||x_i||^2   (precomputed, j-invariant)
    # sqj_ref: [1,  tn]       gamma*||x_j||^2   (precomputed, lane-oriented)
    # wtj_ref: [tn, OUT_PAD]  W^T rows for this column block
    # b_ref:   [1,  OUT_PAD]  bias
    # o_ref:   [tm, OUT_PAD]  f32 output block, resident across the j axis
    j = pl.program_id(1)

    @pl.when(j == 0)
    def _():
        o_ref[...] = jnp.zeros_like(o_ref)

    # 2*gamma*<x_i, x_j> as a plain MXU matmul (rhs already transposed & scaled).
    gram2g = jnp.dot(xi_ref[...], xgj_ref[...],
                     preferred_element_type=jnp.float32)        # [tm, tn]

    # exponent = -gamma*||x_i - x_j||^2; clamp to <= 0 guards fp cancellation
    # noise from the Gram formulation (keeps K[i, i] == 1).
    expo = jnp.minimum(gram2g - sqi_ref[...] - sqj_ref[...], 0.0)
    k = jnp.exp(expo)                                           # [tm, tn]

    # Head matmul accumulated over column blocks directly into the output.
    o_ref[...] += jnp.dot(k, wtj_ref[...], preferred_element_type=jnp.float32)

    @pl.when(j == pl.num_programs(1) - 1)
    def _():
        o_ref[...] += b_ref[...]


def multicat_kernel_svm(x, gamma, w, b, *, tile: int = 512):
    """RBF MultiCatKernelSVM forward.

    x: [N, D] f32, gamma: [1] f32, w: [OUT, N] f32, b: [OUT] or [1, OUT] f32.
    Returns y: [N, OUT] f32.
    """
    n, d = x.shape
    out = w.shape[0]

    out_pad = _round_up(max(out, 1), 128)        # lane-dense head matmul + store
    n_pad, tm, tn = _pick_tiles(n, tile)

    g = gamma.astype(jnp.float32).reshape(())
    xf = x.astype(jnp.float32)
    x_p = jnp.zeros((n_pad, d), jnp.float32).at[:n, :].set(xf)

    # gamma folded into the precomputed pieces: the kernel never sees gamma.
    xg_t = jnp.transpose(x_p) * (2.0 * g)                       # [D, n_pad]
    sq = g * jnp.sum(x_p * x_p, axis=-1)                        # [n_pad]
    sq_i = sq[:, None]                                          # [n_pad, 1]
    sq_j = sq[None, :]                                          # [1, n_pad]

    # W pre-transposed + zero-padded: padded sample rows / class columns are 0,
    # so padded K columns contribute nothing and padded outputs are sliced off.
    w_t = jnp.zeros((n_pad, out_pad), jnp.float32).at[:n, :out].set(
        jnp.transpose(w.astype(jnp.float32)))
    b_p = jnp.zeros((1, out_pad), jnp.float32).at[:, :out].set(
        b.astype(jnp.float32).reshape(1, out))

    grid = (n_pad // tm, n_pad // tn)

    y_pad = pl.pallas_call(
        _svm_kernel,
        out_shape=jax.ShapeDtypeStruct((n_pad, out_pad), jnp.float32),
        grid_spec=pltpu.PrefetchScalarGridSpec(
            num_scalar_prefetch=0,
            grid=grid,
            in_specs=[
                pl.BlockSpec((tm, d), lambda i, j: (i, 0)),          # x row block
                pl.BlockSpec((d, tn), lambda i, j: (0, j)),          # (2g*x)^T cols
                pl.BlockSpec((tm, 1), lambda i, j: (i, 0)),          # g*||x_i||^2
                pl.BlockSpec((1, tn), lambda i, j: (0, j)),          # g*||x_j||^2
                pl.BlockSpec((tn, out_pad), lambda i, j: (j, 0)),    # W^T rows
                pl.BlockSpec((1, out_pad), lambda i, j: (0, 0)),     # bias
            ],
            out_specs=pl.BlockSpec((tm, out_pad), lambda i, j: (i, 0)),
        ),
        compiler_params=pltpu.CompilerParams(
            dimension_semantics=("parallel", "arbitrary"),
            vmem_limit_bytes=32 * 1024 * 1024),
    )(x_p, xg_t, sq_i, sq_j, w_t, b_p)

    return y_pad[:n, :out]


def reference(x, gamma, w, b):
    # Pure-JAX reference mirroring the exact PyTorch broadcast formulation.
    diff = x[:, None, :] - x[None, :, :]
    k = jnp.exp(-gamma[0] * jnp.sum(diff * diff, axis=-1))
    return k @ w.T + b.reshape(1, -1)


if __name__ == "__main__":
    def make_inputs(key, n, d, out):
        kx, kw, kb = jax.random.split(key, 3)
        x = jax.random.normal(kx, (n, d), dtype=jnp.float32)
        bound = 1.0 / float(n) ** 0.5      # PyTorch Linear default init bound
        w = jax.random.uniform(kw, (out, n), dtype=jnp.float32,
                               minval=-bound, maxval=bound)
        b = jax.random.uniform(kb, (1, out), dtype=jnp.float32,
                               minval=-bound, maxval=bound)
        gamma = jnp.array([1.0], dtype=jnp.float32)
        return x, gamma, w, b

    # Module-consistent small shape: BATCH_SIZE = n_samples = 8, D = 32, OUT = 4.
    x, gamma, w, b = make_inputs(jax.random.PRNGKey(0), 8, 32, 4)
    y = jax.block_until_ready(multicat_kernel_svm(x, gamma, w, b))
    y_ref = reference(x, gamma, w, b)
    assert y.shape == (8, 4)
    assert jnp.allclose(y, y_ref, atol=1e-4, rtol=1e-4), "mismatch vs reference (small)"

    # Larger shape, default tile: exercises asymmetric tm (>=2 row blocks) with
    # a single column block (n_pad=384, tm=192, tn=384).
    x2, gamma2, w2, b2 = make_inputs(jax.random.PRNGKey(1), 320, 32, 4)
    y2 = jax.block_until_ready(multicat_kernel_svm(x2, gamma2, w2, b2))
    y2_ref = reference(x2, gamma2, w2, b2)
    assert y2.shape == (320, 4)
    assert jnp.allclose(y2, y2_ref, atol=1e-3, rtol=1e-3), "mismatch vs ref (default tile)"

    # Same shape with small tiles: exercises the full (i, j) grid, padding and
    # j-axis accumulation into the resident output block (grid = (3, 3)).
    y3 = jax.block_until_ready(multicat_kernel_svm(x2, gamma2, w2, b2, tile=128))
    assert y3.shape == (320, 4)
    assert jnp.allclose(y3, y2_ref, atol=1e-3, rtol=1e-3), "mismatch vs ref (tiled)"

    print("KERNEL_OK")
</pallas_src>

<mosaic_0001>
module attributes {stable_mosaic.version = 11 : i64} {
  func.func @_svm_kernel(%arg0: i32, %arg1: i32, %arg2: memref<8x32xf32, #tpu.memory_space<vmem>>, %arg3: memref<32x8xf32, #tpu.memory_space<vmem>>, %arg4: memref<8x1xf32, #tpu.memory_space<vmem>>, %arg5: memref<1x8xf32, #tpu.memory_space<vmem>>, %arg6: memref<8x128xf32, #tpu.memory_space<vmem>>, %arg7: memref<1x128xf32, #tpu.memory_space<vmem>>, %arg8: memref<8x128xf32, #tpu.memory_space<vmem>>) attributes {dimension_semantics = [#tpu.dimension_semantics<parallel>, #tpu.dimension_semantics<arbitrary>], iteration_bounds = array<i64: 1, 1>, scalar_prefetch = 0 : i64, scratch_operands = 0 : i64, tpu.core_type = #tpu.core_type<tc>, window_params = [{transform_indices = @transform_0, window_bounds = array<i64: 8, 32>}, {transform_indices = @transform_1, window_bounds = array<i64: 32, 8>}, {transform_indices = @transform_2, window_bounds = array<i64: 8, 1>}, {transform_indices = @transform_3, window_bounds = array<i64: 1, 8>}, {transform_indices = @transform_4, window_bounds = array<i64: 8, 128>}, {pipeline_mode = #tpu.pipeline_mode<synchronous>, transform_indices = @transform_5, window_bounds = array<i64: 1, 128>}, {transform_indices = @transform_6, window_bounds = array<i64: 8, 128>}]} {
    %c0_i32 = arith.constant 0 : i32
    %0 = arith.cmpi eq, %arg1, %c0_i32 : i32
    %1 = arith.extui %0 : i1 to i32
    %c0_i32_0 = arith.constant 0 : i32
    %2 = arith.cmpi ne, %1, %c0_i32_0 : i32
    scf.if %2 {
      %cst_18 = arith.constant 0.000000e+00 : f32
      %23 = vector.broadcast %cst_18 : f32 to vector<8x128xf32>
      %c0_19 = arith.constant 0 : index
      %c0_20 = arith.constant 0 : index
      %24 = vector.load %arg8[%c0_19, %c0_20] : memref<8x128xf32, #tpu.memory_space<vmem>>, vector<8x128xf32>
      tpu.vector_store %arg8[%c0_19, %c0_20], %23 {strides = array<i32>} : memref<8x128xf32, #tpu.memory_space<vmem>>, vector<8x128xf32>,
    } else {
    }
    %c0 = arith.constant 0 : index
    %c0_1 = arith.constant 0 : index
    %3 = vector.load %arg2[%c0, %c0_1] : memref<8x32xf32, #tpu.memory_space<vmem>>, vector<8x32xf32>
    %c0_2 = arith.constant 0 : index
    %c0_3 = arith.constant 0 : index
    %4 = vector.load %arg3[%c0_2, %c0_3] : memref<32x8xf32, #tpu.memory_space<vmem>>, vector<32x8xf32>
    %cst = arith.constant dense<0.000000e+00> : vector<8x8xf32>
    %5 = tpu.matmul %3, %4, %cst {dimension_numbers = #tpu.dot_dimension_numbers<[1], [0], [0], [1], [0, 0, 1, 1], [], []>} : vector<8x32xf32>, vector<32x8xf32>, vector<8x8xf32> -> vector<8x8xf32>
    %c0_4 = arith.constant 0 : index
    %c0_5 = arith.constant 0 : index
    %6 = vector.load %arg4[%c0_4, %c0_5] : memref<8x1xf32, #tpu.memory_space<vmem>>, vector<8x1xf32>
    %7 = vector.broadcast %6 : vector<8x1xf32> to vector<8x8xf32>
    %8 = arith.subf %5, %7 : vector<8x8xf32>
    %c0_6 = arith.constant 0 : index
    %c0_7 = arith.constant 0 : index
    %9 = vector.load %arg5[%c0_6, %c0_7] : memref<1x8xf32, #tpu.memory_space<vmem>>, vector<1x8xf32>
    %10 = vector.broadcast %9 : vector<1x8xf32> to vector<8x8xf32>
    %11 = arith.subf %8, %10 : vector<8x8xf32>
    %cst_8 = arith.constant 0.000000e+00 : f32
    %12 = vector.broadcast %cst_8 : f32 to vector<8x8xf32>
    %13 = arith.minimumf %11, %12 : vector<8x8xf32>
    %14 = math.exp %13 : vector<8x8xf32>
    %c0_9 = arith.constant 0 : index
    %c0_10 = arith.constant 0 : index
    %15 = vector.load %arg8[%c0_9, %c0_10] : memref<8x128xf32, #tpu.memory_space<vmem>>, vector<8x128xf32>
    %c0_11 = arith.constant 0 : index
    %c0_12 = arith.constant 0 : index
    %16 = vector.load %arg6[%c0_11, %c0_12] : memref<8x128xf32, #tpu.memory_space<vmem>>, vector<8x128xf32>
    %cst_13 = arith.constant dense<0.000000e+00> : vector<8x128xf32>
    %17 = tpu.matmul %14, %16, %cst_13 {dimension_numbers = #tpu.dot_dimension_numbers<[1], [0], [0], [1], [0, 0, 1, 1], [], []>} : vector<8x8xf32>, vector<8x128xf32>, vector<8x128xf32> -> vector<8x128xf32>
    %18 = arith.addf %15, %17 : vector<8x128xf32>
    %c0_14 = arith.constant 0 : index
    %c0_15 = arith.constant 0 : index
    %19 = vector.load %arg8[%c0_14, %c0_15] : memref<8x128xf32, #tpu.memory_space<vmem>>, vector<8x128xf32>
    tpu.vector_store %arg8[%c0_14, %c0_15], %18 {strides = array<i32>} : memref<8x128xf32, #tpu.memory_space<vmem>>, vector<8x128xf32>,
    %c0_i32_16 = arith.constant 0 : i32
    %20 = arith.cmpi eq, %arg1, %c0_i32_16 : i32
    %21 = arith.extui %20 : i1 to i32
    %c0_i32_17 = arith.constant 0 : i32
    %22 = arith.cmpi ne, %21, %c0_i32_17 : i32
    scf.if %22 {
      %c0_18 = arith.constant 0 : index
      %c0_19 = arith.constant 0 : index
      %23 = vector.load %arg8[%c0_18, %c0_19] : memref<8x128xf32, #tpu.memory_space<vmem>>, vector<8x128xf32>
      %c0_20 = arith.constant 0 : index
      %c0_21 = arith.constant 0 : index
      %24 = vector.load %arg7[%c0_20, %c0_21] : memref<1x128xf32, #tpu.memory_space<vmem>>, vector<1x128xf32>
      %25 = vector.broadcast %24 : vector<1x128xf32> to vector<8x128xf32>
      %26 = arith.addf %23, %25 : vector<8x128xf32>
      %c0_22 = arith.constant 0 : index
      %c0_23 = arith.constant 0 : index
      %27 = vector.load %arg8[%c0_22, %c0_23] : memref<8x128xf32, #tpu.memory_space<vmem>>, vector<8x128xf32>
      tpu.vector_store %arg8[%c0_22, %c0_23], %26 {strides = array<i32>} : memref<8x128xf32, #tpu.memory_space<vmem>>, vector<8x128xf32>,
    } else {
    }
    return
  }
  func.func @transform_0(%arg0: i32, %arg1: i32) -> (i32, i32) {
    %c0_i32 = arith.constant 0 : i32
    %c0_i32_0 = arith.constant 0 : i32
    return %arg0, %c0_i32 : i32, i32
  }
  func.func @transform_1(%arg0: i32, %arg1: i32) -> (i32, i32) {
    %c0_i32 = arith.constant 0 : i32
    %c0_i32_0 = arith.constant 0 : i32
    return %c0_i32, %arg1 : i32, i32
  }
  func.func @transform_2(%arg0: i32, %arg1: i32) -> (i32, i32) {
    %c0_i32 = arith.constant 0 : i32
    %c0_i32_0 = arith.constant 0 : i32
    return %arg0, %c0_i32 : i32, i32
  }
  func.func @transform_3(%arg0: i32, %arg1: i32) -> (i32, i32) {
    %c0_i32 = arith.constant 0 : i32
    %c0_i32_0 = arith.constant 0 : i32
    return %c0_i32, %arg1 : i32, i32
  }
  func.func @transform_4(%arg0: i32, %arg1: i32) -> (i32, i32) {
    %c0_i32 = arith.constant 0 : i32
    %c0_i32_0 = arith.constant 0 : i32
    return %arg1, %c0_i32 : i32, i32
  }
  func.func @transform_5(%arg0: i32, %arg1: i32) -> (i32, i32) {
    %c0_i32 = arith.constant 0 : i32
    %c0_i32_0 = arith.constant 0 : i32
    %c0_i32_1 = arith.constant 0 : i32
    return %c0_i32, %c0_i32_0 : i32, i32
  }
  func.func @transform_6(%arg0: i32, %arg1: i32) -> (i32, i32) {
    %c0_i32 = arith.constant 0 : i32
    %c0_i32_0 = arith.constant 0 : i32
    return %arg0, %c0_i32 : i32, i32
  }
}

</mosaic_0001>

<llo_original>
// kernel: tpu_custom_call.1
$region0: #{tpu_custom_call.1}
  #allocation0 [shape = 'u32[]', space=smem, size = 0x4, offset = 0x4, fixed_abs, tag = 'smem constant byte address 0x4 - core index']
  #allocation1 [shape = 'u32[144,128]{1,0:T(1,128)}', space=vmem, size = 0x12000, scoped, tag = 'internal scratch']
  %s0 = inlined_call_operand.vmem [shape: f32[8,32], index: 0, kind: input, shape index: {}]
  %s1 = inlined_call_operand.vmem [shape: f32[32,8], index: 1, kind: input, shape index: {}]
  %s2 = inlined_call_operand.vmem [shape: f32[8,1], index: 2, kind: input, shape index: {}]
  %s3 = inlined_call_operand.vmem [shape: f32[1,8], index: 3, kind: input, shape index: {}]
  %s4 = inlined_call_operand.vmem [shape: f32[8,128], index: 4, kind: input, shape index: {}]
  %s5 = inlined_call_operand.vmem [shape: f32[1,128], index: 5, kind: input, shape index: {}]
  %s6 = inlined_call_operand.hbm [shape: f32[8,128], index: 6, kind: output, shape index: {}]
  %s7 = sld [smem:[#allocation0]]
  $region42: #{tpu_custom_call.1} parent=0
    _
  %s9 = ssub.s32 1, %s7
  %s10 = scalar_select 0, %s9, %s7
  $region1: #{tpu_custom_call.1} parent=0
    #allocation2 [shape = 'u8[4096]{0}', space=vmem, size = 0x1000, scoped, tag = 'output window, operand 0, single buffered']
    #allocation3 [shape = 's32[1]{0}', space=sflag, size = 0x4, scoped, tag = 'scoped memory for tpu_custom_call.1']
    %11 = vsyncpa [#allocation3], 0
    // Predicated region
    $region2: #{tpu_custom_call.1} parent=1 // pred_check
      _
    $region3: #{tpu_custom_call.1} parent=1 // pred_check_branch
      %13 = sbr.rel (0) target = $region5
    $region4: #{tpu_custom_call.1} parent=1 // pred_region
      _
    $region5: #{tpu_custom_call.1} parent=1 // pred_fallthru
      _
    // Predicated region
    $region6: #{tpu_custom_call.1} parent=1 // pred_check
      _
    $region7: #{tpu_custom_call.1} parent=1 // pred_check_branch
      %15 = sbr.rel (0) target = $region9
    $region8: #{tpu_custom_call.1} parent=1 // pred_region
      _
    $region9: #{tpu_custom_call.1} parent=1 // pred_fallthru
      _
    // Predicated region
    $region10: #{tpu_custom_call.1} parent=1 // pred_check
      _
    $region11: #{tpu_custom_call.1} parent=1 // pred_check_branch
      %17 = sbr.rel (0) target = $region13
    $region12: #{tpu_custom_call.1} parent=1 // pred_region
      _
    $region13: #{tpu_custom_call.1} parent=1 // pred_fallthru
      _
    // Predicated region
    $region14: #{tpu_custom_call.1} parent=1 // pred_check
      _
    $region15: #{tpu_custom_call.1} parent=1 // pred_check_branch
      %19 = sbr.rel (0) target = $region17
    $region16: #{tpu_custom_call.1} parent=1 // pred_region
      _
    $region17: #{tpu_custom_call.1} parent=1 // pred_fallthru
      _
    // Predicated region
    $region18: #{tpu_custom_call.1} parent=1 // pred_check
      _
    $region19: #{tpu_custom_call.1} parent=1 // pred_check_branch
      %21 = sbr.rel (0) target = $region21
    $region20: #{tpu_custom_call.1} parent=1 // pred_region
      _
    $region21: #{tpu_custom_call.1} parent=1 // pred_fallthru
      _
    // Predicated region
    $region22: #{tpu_custom_call.1} parent=1 // pred_check
      _
    $region23: #{tpu_custom_call.1} parent=1 // pred_check_branch
      %23 = sbr.rel (0) target = $region25
    $region24: #{tpu_custom_call.1} parent=1 // pred_region
      _
    $region25: #{tpu_custom_call.1} parent=1 // pred_fallthru
      _
    %p24 = scmp.eq.s32.totalorder 0, 0
    // Predicated region
    $region26: #{tpu_custom_call.1} parent=1 // pred_check
      %p25 = pneg %p24
    $region27: #{tpu_custom_call.1} parent=1 // pred_check_branch
      %27 = sbr.rel (%p25) target = $region29
    $region28: #{tpu_custom_call.1} parent=1 // pred_region
      %28 = vst [vmem:[#allocation2] sm:$0xff] 0.0
    $region29: #{tpu_custom_call.1} parent=1 // pred_fallthru
      _
    %v29 = vld [vmem:[%s0] sm:$0xff]
    %v30 = vld [vmem:[%s1] sm:$0xff]
    %v31 = vld [vmem:[%s1 + $0x8] sm:$0xff]
    %v32 = vld [vmem:[%s1 + $0x10] sm:$0xff]
    %v33 = vld [vmem:[%s1 + $0x18] sm:$0xff]
    %vm34 = vcmask 261120
    %v36 = vsel %vm34, %v29, 0
    %38 = vmatprep.subr.mxu0 0.0
    %39 = vmatpush1.msra.mxu0 0.0
    %40 = vmatprep.subr.mxu0 0.0
    %41 = vmatpush1.msra.mxu0 0.0
    %42 = vmatprep.subr.mxu0 0.0
    %43 = vmatpush1.msra.mxu0 0.0
    %44 = vmatprep.subr.mxu0 0.0
    %45 = vmatpush1.msra.mxu0 0.0
    %46 = vmatprep.subr.mxu0 0.0
    %47 = vmatpush1.msra.mxu0 0.0
    %48 = vmatprep.subr.mxu0 0.0
    %49 = vmatpush1.msra.mxu0 0.0
    %50 = vmatprep.subr.mxu0 0.0
    %51 = vmatpush1.msra.mxu0 0.0
    %52 = vmatprep.subr.mxu0 0.0
    %53 = vmatpush1.msra.mxu0 0.0
    %54 = vmatprep.subr.mxu0 0.0
    %55 = vmatpush1.msra.mxu0 0.0
    %56 = vmatprep.subr.mxu0 0.0
    %57 = vmatpush1.msra.mxu0 0.0
    %58 = vmatprep.subr.mxu0 0.0
    %59 = vmatpush1.msra.mxu0 0.0
    %60 = vmatprep.subr.mxu0 0.0
    %61 = vmatpush1.msra.mxu0 0.0
    %62 = vmatprep.subr.mxu0 0.0
    %63 = vmatpush1.msra.mxu0 %v33
    %64 = vmatprep.subr.mxu0 0.0
    %65 = vmatpush1.msra.mxu0 %v32
    %66 = vmatprep.subr.mxu0 0.0
    %67 = vmatpush1.msra.mxu0 %v31
    %68 = vmatprep.subr.mxu0 0.0
    %69 = vmatpush1.msra.mxu0 %v30
    %70 = vmatprep.subr.mxu0 0.0
    %71 = vmatpush2.msra.mxu0 0.0
    %72 = vmatprep.subr.mxu0 0.0
    %73 = vmatpush2.msra.mxu0 0.0
    %74 = vmatprep.subr.mxu0 0.0
    %75 = vmatpush2.msra.mxu0 0.0
    %76 = vmatprep.subr.mxu0 0.0
    %77 = vmatpush2.msra.mxu0 0.0
    %78 = vmatprep.subr.mxu0 0.0
    %79 = vmatpush2.msra.mxu0 0.0
    %80 = vmatprep.subr.mxu0 0.0
    %81 = vmatpush2.msra.mxu0 0.0
    %82 = vmatprep.subr.mxu0 0.0
    %83 = vmatpush2.msra.mxu0 0.0
    %84 = vmatprep.subr.mxu0 0.0
    %85 = vmatpush2.msra.mxu0 0.0
    %86 = vmatprep.subr.mxu0 0.0
    %87 = vmatpush2.msra.mxu0 0.0
    %88 = vmatprep.subr.mxu0 0.0
    %89 = vmatpush2.msra.mxu0 0.0
    %90 = vmatprep.subr.mxu0 0.0
    %91 = vmatpush2.msra.mxu0 0.0
    %92 = vmatprep.subr.mxu0 0.0
    %93 = vmatpush2.msra.mxu0 0.0
    %94 = vmatprep.subr.mxu0 0.0
    %95 = vmatpush2.msra.mxu0 0.0
    %96 = vmatprep.subr.mxu0 0.0
    %97 = vmatpush2.msra.mxu0 0.0
    %98 = vmatprep.subr.mxu0 0.0
    %99 = vmatpush2.msra.mxu0 0.0
    %100 = vmatprep.subr.mxu0 0.0
    %101 = vmatpush2.msra.mxu0 0.0
    %102 = vmatprep.mubr.f32.mxu0 0.0
    %103 = vmatmul.mubr.f32.gmra.mxu0 %v36
    %v104 = vpop.f32.mrf.mxu0
    %v105 = vadd.f32 0.0, %v104
    %v106 = vpop.f32.mrf.mxu0
    %107 = vdwg.mxu0
    %v108 = vld [vmem:[%s2] sm:$0xff]
    %110 = vset.pattern.permute.xlu0 0
    %111 = vperm.xlu0 %110, %v108
    %v112 = vpop.permute.xlu0 %111
    %v114 = vsub.f32 %v105, %v112
    %v115 = vld [vmem:[%s3] sm:$0x1]
    %v117 = vlaneseq
    %v118 = vshrl.u32 %v117, 7
    %v119 = vsub.s32 0, %v118
    %v120 = vrot.slane %v115, %v119
    %v122 = vsub.f32 %v114, %v120
    %v123 = vmin.f32 %v122, 0.0
    %v124 = vmul.f32 %v123, 1.442695
    %v125 = vpow.pop %v124
    %v126 = vld [vmem:[#allocation2] sm:$0xff]
    %v127 = vld [vmem:[%s4] sm:$0xff]
    %vm128 = vcmask 64512
    %v130 = vsel %vm128, %v125, 0
    %132 = vmatprep.subr.mxu0 0.0
    %133 = vmatpush1.msra.mxu0 0.0
    %134 = vmatprep.subr.mxu0 0.0
    %135 = vmatpush1.msra.mxu0 0.0
    %136 = vmatprep.subr.mxu0 0.0
    %137 = vmatpush1.msra.mxu0 0.0
    %138 = vmatprep.subr.mxu0 0.0
    %139 = vmatpush1.msra.mxu0 0.0
    %140 = vmatprep.subr.mxu0 0.0
    %141 = vmatpush1.msra.mxu0 0.0
    %142 = vmatprep.subr.mxu0 0.0
    %143 = vmatpush1.msra.mxu0 0.0
    %144 = vmatprep.subr.mxu0 0.0
    %145 = vmatpush1.msra.mxu0 0.0
    %146 = vmatprep.subr.mxu0 0.0
    %147 = vmatpush1.msra.mxu0 0.0
    %148 = vmatprep.subr.mxu0 0.0
    %149 = vmatpush1.msra.mxu0 0.0
    %150 = vmatprep.subr.mxu0 0.0
    %151 = vmatpush1.msra.mxu0 0.0
    %152 = vmatprep.subr.mxu0 0.0
    %153 = vmatpush1.msra.mxu0 0.0
    %154 = vmatprep.subr.mxu0 0.0
    %155 = vmatpush1.msra.mxu0 0.0
    %156 = vmatprep.subr.mxu0 0.0
    %157 = vmatpush1.msra.mxu0 0.0
    %158 = vmatprep.subr.mxu0 0.0
    %159 = vmatpush1.msra.mxu0 0.0
    %160 = vmatprep.subr.mxu0 0.0
    %161 = vmatpush1.msra.mxu0 0.0
    %162 = vmatprep.subr.mxu0 0.0
    %163 = vmatpush1.msra.mxu0 %v127
    %164 = vmatprep.subr.mxu0 0.0
    %165 = vmatpush2.msra.mxu0 0.0
    %166 = vmatprep.subr.mxu0 0.0
    %167 = vmatpush2.msra.mxu0 0.0
    %168 = vmatprep.subr.mxu0 0.0
    %169 = vmatpush2.msra.mxu0 0.0
    %170 = vmatprep.subr.mxu0 0.0
    %171 = vmatpush2.msra.mxu0 0.0
    %172 = vmatprep.subr.mxu0 0.0
    %173 = vmatpush2.msra.mxu0 0.0
    %174 = vmatprep.subr.mxu0 0.0
    %175 = vmatpush2.msra.mxu0 0.0
    %176 = vmatprep.subr.mxu0 0.0
    %177 = vmatpush2.msra.mxu0 0.0
    %178 = vmatprep.subr.mxu0 0.0
    %179 = vmatpush2.msra.mxu0 0.0
    %180 = vmatprep.subr.mxu0 0.0
    %181 = vmatpush2.msra.mxu0 0.0
    %182 = vmatprep.subr.mxu0 0.0
    %183 = vmatpush2.msra.mxu0 0.0
    %184 = vmatprep.subr.mxu0 0.0
    %185 = vmatpush2.msra.mxu0 0.0
    %186 = vmatprep.subr.mxu0 0.0
    %187 = vmatpush2.msra.mxu0 0.0
    %188 = vmatprep.subr.mxu0 0.0
    %189 = vmatpush2.msra.mxu0 0.0
    %190 = vmatprep.subr.mxu0 0.0
    %191 = vmatpush2.msra.mxu0 0.0
    %192 = vmatprep.subr.mxu0 0.0
    %193 = vmatpush2.msra.mxu0 0.0
    %194 = vmatprep.subr.mxu0 0.0
    %195 = vmatpush2.msra.mxu0 0.0
    %196 = vmatprep.mubr.f32.mxu0 0.0
    %197 = vmatmul.mubr.f32.gmra.mxu0 %v130
    %v198 = vpop.f32.mrf.mxu0
    %v199 = vadd.f32 0.0, %v198
    %v200 = vpop.f32.mrf.mxu0
    %201 = vdwg.mxu0
    %v202 = vadd.f32 %v126, %v199
    %203 = vst [vmem:[#allocation2] sm:$0xff] %v202
    // Predicated region
    $region30: #{tpu_custom_call.1} parent=1 // pred_check
      %p204 = pneg %p24
    $region31: #{tpu_custom_call.1} parent=1 // pred_check_branch
      %206 = sbr.rel (%p204) target = $region33
    $region32: #{tpu_custom_call.1} parent=1 // pred_region
      %v207 = vld [vmem:[#allocation2] sm:$0xff]
      %v208 = vld [vmem:[%s5] sm:$0x1]
      %v210 = vlaneseq
      %v211 = vshrl.u32 %v210, 7
      %v212 = vsub.s32 0, %v211
      %v213 = vrot.slane %v208, %v212
      %v215 = vadd.f32 %v207, %v213
      %216 = vst [vmem:[#allocation2] sm:$0xff] %v215
    $region33: #{tpu_custom_call.1} parent=1 // pred_fallthru
      _
    // Predicated region
    $region34: #{tpu_custom_call.1} parent=1 // pred_check
      _
    $region35: #{tpu_custom_call.1} parent=1 // pred_check_branch
      %218 = sbr.rel (0) target = $region37
    $region36: #{tpu_custom_call.1} parent=1 // pred_region
      %s220 = ssub.s32 128, 128
      %221 = vsyncadd [#allocation3], %s220
      %s223 = sshll.u32 [#allocation2], 4
      %s224 = int_to_ptr.vmem [resolvable:$true] %s223
      %226 = dma.vmem_to_hbm [thread:$0]  %s224, 128, %s6, [#allocation3]
    $region37: #{tpu_custom_call.1} parent=1 // pred_fallthru
      _
    // Predicated region
    $region38: #{tpu_custom_call.1} parent=1 // pred_check
      _
    $region39: #{tpu_custom_call.1} parent=1 // pred_check_branch
      %228 = sbr.rel (0) target = $region41
    $region40: #{tpu_custom_call.1} parent=1 // pred_region
      %229 = dma.done [#allocation3], 128
    $region41: #{tpu_custom_call.1} parent=1 // pred_fallthru
      _
    %230 = vsyncpa [#allocation3], 1

</llo_original>
